<compile_context>
chip_gen: v6e
topology: v6e:2x2x1
jax: 0.10.0
libtpu: 0.0.40
codegen_flags: <defaults>
</compile_context>

<pallas_src>
import jax
import jax.numpy as jnp
from jax.experimental import pallas as pl
from jax.experimental.pallas import tpu as pltpu


def _round_up(x, m):
    return (x + m - 1) // m * m


# --------------------------- kernel 1: GRU recurrence ---------------------------
def gru_recurrence_kernel(h0_ref, x_ref, wih_ref, whh_ref, bih_ref, bhh_ref,
                          hs_ref, h_scratch):
    """Grid axis 0 == time step t (strictly sequential / 'arbitrary').

    Per-step shapes: h0 (Bp, Hp), x (Bp, E), W_ih (E, 3Hp), W_hh (Hp, 3Hp),
    biases (1, 3Hp); output hs_t (Bp, Hp).  Hidden state persists across grid
    steps in VMEM scratch.  PyTorch gate order [r, z, n]; each gate is padded
    independently to Hp so the slices below are lane-aligned.
    """
    t = pl.program_id(0)
    Hp = h_scratch.shape[-1]

    @pl.when(t == 0)
    def _():
        h_scratch[...] = h0_ref[...]

    mm_dtype = wih_ref.dtype            # f32 or bf16 MXU operands
    h_prev = h_scratch[...]             # hidden state kept in f32

    gi = jnp.dot(x_ref[...].astype(mm_dtype), wih_ref[...],
                 preferred_element_type=jnp.float32) + bih_ref[...]
    gh = jnp.dot(h_prev.astype(mm_dtype), whh_ref[...],
                 preferred_element_type=jnp.float32) + bhh_ref[...]

    r = jax.nn.sigmoid(gi[:, 0 * Hp:1 * Hp] + gh[:, 0 * Hp:1 * Hp])
    z = jax.nn.sigmoid(gi[:, 1 * Hp:2 * Hp] + gh[:, 1 * Hp:2 * Hp])
    n = jnp.tanh(gi[:, 2 * Hp:3 * Hp] + r * gh[:, 2 * Hp:3 * Hp])
    h_new = (1.0 - z) * n + z * h_prev

    h_scratch[...] = h_new
    hs_ref[...] = h_new.astype(hs_ref.dtype)


# ------------------ kernel 2: vocab projection + log_softmax --------------------
def vocab_logsoftmax_kernel(h_ref, wout_ref, bout_ref, out_ref):
    """logp = log_softmax(h @ W_out + b_out, axis=-1) for one tile of rows."""
    logits = jnp.dot(h_ref[...].astype(wout_ref.dtype), wout_ref[...],
                     preferred_element_type=jnp.float32) + bout_ref[...]
    m = jnp.max(logits, axis=-1, keepdims=True)
    shifted = logits - m
    lse = jnp.log(jnp.sum(jnp.exp(shifted), axis=-1, keepdims=True))
    out_ref[...] = (shifted - lse).astype(out_ref.dtype)


# ----------------------------------- wrapper ------------------------------------
def gru_decoder_forward(params, argdict, input_ids, latent_space,
                        labels=None, append_labels=False,
                        matmul_dtype=jnp.float32):
    """Mirrors GRU_Decoder.forward (nn.GRU batch_first=True).

    input_ids:    (B, T) int32            == batch['input']
    latent_space: (1, B, latent_size)     (num_layers=1 GRU hidden layout)
    labels:       (B,)                    == batch['label']
    returns logp: (B, T, vocab_size) float32
    """
    # ---- plain-JAX glue: word dropout + embedding gather + label append ----
    # argdict['word_dropout'] == 0.0, so the stochastic word-dropout branch is
    # skipped (exactly as in PyTorch when the rate is 0).
    # TODO(synk): embedding gather + word-dropout RNG stay in JAX glue; a
    # data-dependent Pallas gather is not worthwhile at this scale.
    emb = jnp.take(params['embedding'], input_ids, axis=0)          # (B, T, E)
    if append_labels:
        labs = jnp.broadcast_to(labels[:, None], emb.shape[:2])
        emb = emb.at[:, :, -1].set(labs.astype(emb.dtype))

    B, T, E = emb.shape
    H = params['w_hh'].shape[0]
    V = params['w_out'].shape[1]

    # ---- pad to a TPU-friendly layout (exact zeros; real results unchanged) ----
    Bp = _round_up(B, 8)         # sublane multiple
    Hp = _round_up(H, 128)       # lane-aligned per-gate boundaries

    def pad_gate_cols(w):        # (..., 3H) -> (..., 3Hp), per-gate zero pad
        r_, z_, n_ = jnp.split(w, 3, axis=-1)
        widths = [(0, 0)] * (w.ndim - 1) + [(0, Hp - H)]
        return jnp.concatenate(
            [jnp.pad(r_, widths), jnp.pad(z_, widths), jnp.pad(n_, widths)],
            axis=-1)

    w_ih = pad_gate_cols(params['w_ih']).astype(matmul_dtype)              # (E, 3Hp)
    w_hh = pad_gate_cols(
        jnp.pad(params['w_hh'], ((0, Hp - H), (0, 0)))).astype(matmul_dtype)  # (Hp, 3Hp)
    b_ih = pad_gate_cols(params['b_ih'])                                    # (1, 3Hp) f32
    b_hh = pad_gate_cols(params['b_hh'])                                    # (1, 3Hp) f32
    w_out = jnp.pad(params['w_out'], ((0, Hp - H), (0, 0))).astype(matmul_dtype)  # (Hp, V)
    b_out = params['b_out']                                                 # (1, V) f32
    w_l2h = jnp.pad(params['w_l2h'], ((0, 0), (0, Hp - H)))                 # (L, Hp)
    b_l2h = jnp.pad(params['b_l2h'], ((0, 0), (0, Hp - H)))                 # (1, Hp)

    # h0 = latent2hidden(latent): plain XLA matmul outside the recurrent kernel.
    latent2 = jnp.pad(latent_space[0], ((0, Bp - B), (0, 0)))               # (Bp, L)
    h0 = (latent2 @ w_l2h + b_l2h).astype(jnp.float32)                      # (Bp, Hp)

    x_tm = jnp.transpose(emb, (1, 0, 2))                                    # (T, B, E)
    x_tm = jnp.pad(x_tm, ((0, 0), (0, Bp - B), (0, 0))).astype(matmul_dtype)  # (T, Bp, E)

    # ---- kernel 1: sequential GRU recurrence, emits h_t for every step ----
    hs = pl.pallas_call(
        gru_recurrence_kernel,
        out_shape=jax.ShapeDtypeStruct((T, Bp, Hp), jnp.float32),
        grid_spec=pltpu.PrefetchScalarGridSpec(
            num_scalar_prefetch=0,
            grid=(T,),
            in_specs=[
                pl.BlockSpec((Bp, Hp), lambda t: (0, 0)),             # h0
                pl.BlockSpec((None, Bp, E), lambda t: (t, 0, 0)),     # x_t (T squeezed)
                pl.BlockSpec((E, 3 * Hp), lambda t: (0, 0)),          # W_ih
                pl.BlockSpec((Hp, 3 * Hp), lambda t: (0, 0)),         # W_hh
                pl.BlockSpec((1, 3 * Hp), lambda t: (0, 0)),          # b_ih
                pl.BlockSpec((1, 3 * Hp), lambda t: (0, 0)),          # b_hh
            ],
            out_specs=pl.BlockSpec((None, Bp, Hp), lambda t: (t, 0, 0)),
            scratch_shapes=[pltpu.VMEM((Bp, Hp), jnp.float32)],       # persistent h
        ),
        compiler_params=pltpu.CompilerParams(
            dimension_semantics=("arbitrary",)),                      # true recurrence
    )(h0, x_tm, w_ih, w_hh, b_ih, b_hh)

    # ---- kernel 2: batched vocab projection + log_softmax (parallel grid) ----
    rows = T * Bp
    hs_flat = hs.reshape(rows, Hp).astype(matmul_dtype)
    row_tile = 256 if rows >= 256 else rows
    rows_p = _round_up(rows, row_tile)
    if rows_p != rows:
        hs_flat = jnp.pad(hs_flat, ((0, rows_p - rows), (0, 0)))

    logp_flat = pl.pallas_call(
        vocab_logsoftmax_kernel,
        out_shape=jax.ShapeDtypeStruct((rows_p, V), jnp.float32),
        grid_spec=pltpu.PrefetchScalarGridSpec(
            num_scalar_prefetch=0,
            grid=(rows_p // row_tile,),
            in_specs=[
                pl.BlockSpec((row_tile, Hp), lambda i: (i, 0)),       # h rows
                pl.BlockSpec((Hp, V), lambda i: (0, 0)),              # W_out
                pl.BlockSpec((1, V), lambda i: (0, 0)),               # b_out
            ],
            out_specs=pl.BlockSpec((row_tile, V), lambda i: (i, 0)),
        ),
        compiler_params=pltpu.CompilerParams(
            dimension_semantics=("parallel",)),                       # megacore-shardable
    )(hs_flat, w_out, b_out)

    logp = logp_flat[:rows].reshape(T, Bp, V)[:, :B]                  # (T, B, V)
    return jnp.transpose(logp, (1, 0, 2))                             # (B, T, V)


# ----------------------- pure-JAX reference (for checking) -----------------------
def gru_decoder_reference(params, input_ids, latent_space, labels, append_labels):
    emb = jnp.take(params['embedding'], input_ids, axis=0)
    if append_labels:
        labs = jnp.broadcast_to(labels[:, None], emb.shape[:2])
        emb = emb.at[:, :, -1].set(labs.astype(emb.dtype))
    H = params['w_hh'].shape[0]
    h0 = latent_space[0] @ params['w_l2h'] + params['b_l2h'][0]

    def step(h, x_t):
        gi = x_t @ params['w_ih'] + params['b_ih'][0]
        gh = h @ params['w_hh'] + params['b_hh'][0]
        r = jax.nn.sigmoid(gi[:, :H] + gh[:, :H])
        z = jax.nn.sigmoid(gi[:, H:2 * H] + gh[:, H:2 * H])
        n = jnp.tanh(gi[:, 2 * H:] + r * gh[:, 2 * H:])
        h_new = (1.0 - z) * n + z * h
        return h_new, h_new

    _, hs = jax.lax.scan(step, h0, jnp.transpose(emb, (1, 0, 2)))
    hs = jnp.transpose(hs, (1, 0, 2))
    logits = hs @ params['w_out'] + params['b_out'][0]
    return jax.nn.log_softmax(logits, axis=-1)


def init_params(key, vocab_size, embedding_size, hidden_size, latent_size):
    ks = jax.random.split(key, 9)
    u = lambda k, shape, s: jax.random.uniform(k, shape, jnp.float32, -s, s)
    return {
        'embedding': u(ks[0], (vocab_size, embedding_size), 0.5),
        'w_l2h': u(ks[1], (latent_size, hidden_size), 0.1),
        'b_l2h': u(ks[2], (1, hidden_size), 0.1),
        'w_ih': u(ks[3], (embedding_size, 3 * hidden_size), 0.1),
        'w_hh': u(ks[4], (hidden_size, 3 * hidden_size), 0.1),
        'b_ih': u(ks[5], (1, 3 * hidden_size), 0.1),
        'b_hh': u(ks[6], (1, 3 * hidden_size), 0.1),
        'w_out': u(ks[7], (hidden_size, vocab_size), 0.1),
        'b_out': u(ks[8], (1, vocab_size), 0.1),
    }


if __name__ == "__main__":
    B, T = 2, 8
    argdict = dict(hidden_size=32, latent_size=16, embedd_size=32,
                   input_size=128, sos_idx=1, pad_idx=0, unk_idx=2,
                   word_dropout=0.0)
    H, L, E, V = (argdict['hidden_size'], argdict['latent_size'],
                  argdict['embedd_size'], argdict['input_size'])

    key = jax.random.PRNGKey(0)
    kp, ki, kz, kl = jax.random.split(key, 4)
    params = init_params(kp, V, E, H, L)

    # batch['input']: starts with sos, ends with pad, like the training batches.
    input_ids = jax.random.randint(ki, (B, T), 3, V, dtype=jnp.int32)
    input_ids = input_ids.at[:, 0].set(argdict['sos_idx'])
    input_ids = input_ids.at[:, -1].set(argdict['pad_idx'])
    latent_space = jax.random.normal(kz, (1, B, L), jnp.float32)
    labels = jax.random.randint(kl, (B,), 0, 2, dtype=jnp.int32)

    ref = gru_decoder_reference(params, input_ids, latent_space, labels, True)

    # f32 MXU operands: must match the pure-JAX reference tightly.
    logp = gru_decoder_forward(params, argdict, input_ids, latent_space,
                               labels=labels, append_labels=True,
                               matmul_dtype=jnp.float32)
    logp = jax.block_until_ready(logp)
    assert logp.shape == (B, T, V), logp.shape
    assert jnp.allclose(logp, ref, atol=1e-5, rtol=1e-5), \
        float(jnp.max(jnp.abs(logp - ref)))

    # bf16 MXU operands (f32 accumulation + f32 nonlinearities): loose check.
    logp_bf16 = gru_decoder_forward(params, argdict, input_ids, latent_space,
                                    labels=labels, append_labels=True,
                                    matmul_dtype=jnp.bfloat16)
    logp_bf16 = jax.block_until_ready(logp_bf16)
    assert logp_bf16.shape == (B, T, V), logp_bf16.shape
    assert bool(jnp.all(jnp.isfinite(logp_bf16)))
    assert float(jnp.max(jnp.abs(logp_bf16 - ref))) < 0.2

    print("KERNEL_OK")
</pallas_src>

<mosaic_0001>
module attributes {stable_mosaic.version = 11 : i64} {
  func.func @gru_recurrence_kernel(%arg0: i32, %arg1: memref<8x128xf32, #tpu.memory_space<vmem>>, %arg2: memref<1x8x32xf32, #tpu.memory_space<vmem>>, %arg3: memref<32x384xf32, #tpu.memory_space<vmem>>, %arg4: memref<128x384xf32, #tpu.memory_space<vmem>>, %arg5: memref<1x384xf32, #tpu.memory_space<vmem>>, %arg6: memref<1x384xf32, #tpu.memory_space<vmem>>, %arg7: memref<1x8x128xf32, #tpu.memory_space<vmem>>, %arg8: memref<8x128xf32, #tpu.memory_space<vmem>>) attributes {dimension_semantics = [#tpu.dimension_semantics<arbitrary>], iteration_bounds = array<i64: 8>, scalar_prefetch = 0 : i64, scratch_operands = 1 : i64, tpu.core_type = #tpu.core_type<tc>, window_params = [{pipeline_mode = #tpu.pipeline_mode<synchronous>, transform_indices = @transform_0, window_bounds = array<i64: 8, 128>}, {transform_indices = @transform_1, window_bounds = array<i64: 1, 8, 32>}, {pipeline_mode = #tpu.pipeline_mode<synchronous>, transform_indices = @transform_2, window_bounds = array<i64: 32, 384>}, {pipeline_mode = #tpu.pipeline_mode<synchronous>, transform_indices = @transform_3, window_bounds = array<i64: 128, 384>}, {pipeline_mode = #tpu.pipeline_mode<synchronous>, transform_indices = @transform_4, window_bounds = array<i64: 1, 384>}, {pipeline_mode = #tpu.pipeline_mode<synchronous>, transform_indices = @transform_5, window_bounds = array<i64: 1, 384>}, {transform_indices = @transform_6, window_bounds = array<i64: 1, 8, 128>}]} {
    %c0_i32 = arith.constant 0 : i32
    %0 = arith.cmpi eq, %arg0, %c0_i32 : i32
    %1 = arith.extui %0 : i1 to i32
    %c0_i32_0 = arith.constant 0 : i32
    %2 = arith.cmpi ne, %1, %c0_i32_0 : i32
    scf.if %2 {
      %c0_22 = arith.constant 0 : index
      %c0_23 = arith.constant 0 : index
      %46 = vector.load %arg1[%c0_22, %c0_23] : memref<8x128xf32, #tpu.memory_space<vmem>>, vector<8x128xf32>
      %c0_24 = arith.constant 0 : index
      %c0_25 = arith.constant 0 : index
      %47 = vector.load %arg8[%c0_24, %c0_25] : memref<8x128xf32, #tpu.memory_space<vmem>>, vector<8x128xf32>
      tpu.vector_store %arg8[%c0_24, %c0_25], %46 {strides = array<i32>} : memref<8x128xf32, #tpu.memory_space<vmem>>, vector<8x128xf32>,
    } else {
    }
    %c0 = arith.constant 0 : index
    %c0_1 = arith.constant 0 : index
    %3 = vector.load %arg8[%c0, %c0_1] : memref<8x128xf32, #tpu.memory_space<vmem>>, vector<8x128xf32>
    %c0_2 = arith.constant 0 : index
    %c0_3 = arith.constant 0 : index
    %c0_4 = arith.constant 0 : index
    %4 = vector.load %arg2[%c0_2, %c0_3, %c0_4] : memref<1x8x32xf32, #tpu.memory_space<vmem>>, vector<1x8x32xf32>
    %5 = vector.shape_cast %4 : vector<1x8x32xf32> to vector<8x32xf32>
    %c0_5 = arith.constant 0 : index
    %c0_6 = arith.constant 0 : index
    %6 = vector.load %arg3[%c0_5, %c0_6] : memref<32x384xf32, #tpu.memory_space<vmem>>, vector<32x384xf32>
    %cst = arith.constant dense<0.000000e+00> : vector<8x384xf32>
    %7 = tpu.matmul %5, %6, %cst {dimension_numbers = #tpu.dot_dimension_numbers<[1], [0], [0], [1], [0, 0, 1, 1], [], []>} : vector<8x32xf32>, vector<32x384xf32>, vector<8x384xf32> -> vector<8x384xf32>
    %c0_7 = arith.constant 0 : index
    %c0_8 = arith.constant 0 : index
    %8 = vector.load %arg5[%c0_7, %c0_8] : memref<1x384xf32, #tpu.memory_space<vmem>>, vector<1x384xf32>
    %9 = vector.broadcast %8 : vector<1x384xf32> to vector<8x384xf32>
    %10 = arith.addf %7, %9 : vector<8x384xf32>
    %c0_9 = arith.constant 0 : index
    %c0_10 = arith.constant 0 : index
    %11 = vector.load %arg4[%c0_9, %c0_10] : memref<128x384xf32, #tpu.memory_space<vmem>>, vector<128x384xf32>
    %cst_11 = arith.constant dense<0.000000e+00> : vector<8x384xf32>
    %12 = tpu.matmul %3, %11, %cst_11 {dimension_numbers = #tpu.dot_dimension_numbers<[1], [0], [0], [1], [0, 0, 1, 1], [], []>} : vector<8x128xf32>, vector<128x384xf32>, vector<8x384xf32> -> vector<8x384xf32>
    %c0_12 = arith.constant 0 : index
    %c0_13 = arith.constant 0 : index
    %13 = vector.load %arg6[%c0_12, %c0_13] : memref<1x384xf32, #tpu.memory_space<vmem>>, vector<1x384xf32>
    %14 = vector.broadcast %13 : vector<1x384xf32> to vector<8x384xf32>
    %15 = arith.addf %12, %14 : vector<8x384xf32>
    %16 = vector.extract_strided_slice %10 {offsets = [0, 0], sizes = [8, 128], strides = [1, 1]} : vector<8x384xf32> to vector<8x128xf32>
    %17 = vector.extract_strided_slice %15 {offsets = [0, 0], sizes = [8, 128], strides = [1, 1]} : vector<8x384xf32> to vector<8x128xf32>
    %18 = arith.addf %16, %17 : vector<8x128xf32>
    %19 = arith.negf %18 : vector<8x128xf32>
    %20 = math.exp %19 : vector<8x128xf32>
    %cst_14 = arith.constant 1.000000e+00 : f32
    %21 = vector.broadcast %cst_14 : f32 to vector<8x128xf32>
    %22 = arith.addf %21, %20 : vector<8x128xf32>
    %23 = arith.divf %21, %22 : vector<8x128xf32>
    %24 = vector.extract_strided_slice %10 {offsets = [0, 128], sizes = [8, 128], strides = [1, 1]} : vector<8x384xf32> to vector<8x128xf32>
    %25 = vector.extract_strided_slice %15 {offsets = [0, 128], sizes = [8, 128], strides = [1, 1]} : vector<8x384xf32> to vector<8x128xf32>
    %26 = arith.addf %24, %25 : vector<8x128xf32>
    %27 = arith.negf %26 : vector<8x128xf32>
    %28 = math.exp %27 : vector<8x128xf32>
    %cst_15 = arith.constant 1.000000e+00 : f32
    %29 = vector.broadcast %cst_15 : f32 to vector<8x128xf32>
    %30 = arith.addf %29, %28 : vector<8x128xf32>
    %31 = arith.divf %29, %30 : vector<8x128xf32>
    %32 = vector.extract_strided_slice %10 {offsets = [0, 256], sizes = [8, 128], strides = [1, 1]} : vector<8x384xf32> to vector<8x128xf32>
    %33 = vector.extract_strided_slice %15 {offsets = [0, 256], sizes = [8, 128], strides = [1, 1]} : vector<8x384xf32> to vector<8x128xf32>
    %34 = arith.mulf %23, %33 : vector<8x128xf32>
    %35 = arith.addf %32, %34 : vector<8x128xf32>
    %36 = math.tanh %35 : vector<8x128xf32>
    %cst_16 = arith.constant 1.000000e+00 : f32
    %37 = vector.broadcast %cst_16 : f32 to vector<8x128xf32>
    %38 = arith.subf %37, %31 : vector<8x128xf32>
    %39 = arith.mulf %38, %36 : vector<8x128xf32>
    %40 = arith.mulf %31, %3 : vector<8x128xf32>
    %41 = arith.addf %39, %40 : vector<8x128xf32>
    %c0_17 = arith.constant 0 : index
    %c0_18 = arith.constant 0 : index
    %42 = vector.load %arg8[%c0_17, %c0_18] : memref<8x128xf32, #tpu.memory_space<vmem>>, vector<8x128xf32>
    tpu.vector_store %arg8[%c0_17, %c0_18], %41 {strides = array<i32>} : memref<8x128xf32, #tpu.memory_space<vmem>>, vector<8x128xf32>,
    %c0_19 = arith.constant 0 : index
    %c0_20 = arith.constant 0 : index
    %c0_21 = arith.constant 0 : index
    %43 = vector.load %arg7[%c0_19, %c0_20, %c0_21] : memref<1x8x128xf32, #tpu.memory_space<vmem>>, vector<1x8x128xf32>
    %44 = vector.shape_cast %43 : vector<1x8x128xf32> to vector<8x128xf32>
    %45 = vector.shape_cast %41 : vector<8x128xf32> to vector<1x8x128xf32>
    tpu.vector_store %arg7[%c0_19, %c0_20, %c0_21], %45 {strides = array<i32>} : memref<1x8x128xf32, #tpu.memory_space<vmem>>, vector<1x8x128xf32>,
    return
  }
  func.func @transform_0(%arg0: i32) -> (i32, i32) {
    %c0_i32 = arith.constant 0 : i32
    %c0_i32_0 = arith.constant 0 : i32
    %c0_i32_1 = arith.constant 0 : i32
    return %c0_i32, %c0_i32_0 : i32, i32
  }
  func.func @transform_1(%arg0: i32) -> (i32, i32, i32) {
    %c0_i32 = arith.constant 0 : i32
    %c0_i32_0 = arith.constant 0 : i32
    %c0_i32_1 = arith.constant 0 : i32
    return %arg0, %c0_i32, %c0_i32_0 : i32, i32, i32
  }
  func.func @transform_2(%arg0: i32) -> (i32, i32) {
    %c0_i32 = arith.constant 0 : i32
    %c0_i32_0 = arith.constant 0 : i32
    %c0_i32_1 = arith.constant 0 : i32
    return %c0_i32, %c0_i32_0 : i32, i32
  }
  func.func @transform_3(%arg0: i32) -> (i32, i32) {
    %c0_i32 = arith.constant 0 : i32
    %c0_i32_0 = arith.constant 0 : i32
    %c0_i32_1 = arith.constant 0 : i32
    return %c0_i32, %c0_i32_0 : i32, i32
  }
  func.func @transform_4(%arg0: i32) -> (i32, i32) {
    %c0_i32 = arith.constant 0 : i32
    %c0_i32_0 = arith.constant 0 : i32
    %c0_i32_1 = arith.constant 0 : i32
    return %c0_i32, %c0_i32_0 : i32, i32
  }
  func.func @transform_5(%arg0: i32) -> (i32, i32) {
    %c0_i32 = arith.constant 0 : i32
    %c0_i32_0 = arith.constant 0 : i32
    %c0_i32_1 = arith.constant 0 : i32
    return %c0_i32, %c0_i32_0 : i32, i32
  }
  func.func @transform_6(%arg0: i32) -> (i32, i32, i32) {
    %c0_i32 = arith.constant 0 : i32
    %c0_i32_0 = arith.constant 0 : i32
    %c0_i32_1 = arith.constant 0 : i32
    return %arg0, %c0_i32, %c0_i32_0 : i32, i32, i32
  }
}

</mosaic_0001>

<llo_original>
// kernel: tpu_custom_call.1
$region0: #{tpu_custom_call.1}
  #allocation0 [shape = 'u32[]', space=smem, size = 0x4, offset = 0x4, fixed_abs, tag = 'smem constant byte address 0x4 - core index']
  #allocation1 [shape = 'u32[144,128]{1,0:T(1,128)}', space=vmem, size = 0x12000, scoped, tag = 'internal scratch']
  #allocation2 [shape = 'f32[8,128]{1,0:T(8,128)}', space=vmem, size = 0x1000, scoped, tag = 'scratch operand']
  %s0 = inlined_call_operand.hbm [shape: f32[8,128], index: 0, kind: input, shape index: {}]
  %s1 = inlined_call_operand.hbm [shape: f32[8,8,32], index: 1, kind: input, shape index: {}]
  %s2 = inlined_call_operand.hbm [shape: f32[32,384], index: 2, kind: input, shape index: {}]
  %s3 = inlined_call_operand.hbm [shape: f32[128,384], index: 3, kind: input, shape index: {}]
  %s4 = inlined_call_operand.vmem [shape: f32[1,384], index: 4, kind: input, shape index: {}]
  %s5 = inlined_call_operand.vmem [shape: f32[1,384], index: 5, kind: input, shape index: {}]
  %s6 = inlined_call_operand.hbm [shape: f32[8,8,128], index: 6, kind: output, shape index: {}]
  %s7 = sld [smem:[#allocation0]]
  $region77: #{tpu_custom_call.1} parent=0
    _
  %s9 = ssub.s32 1, %s7
  %s10 = scalar_select 0, %s9, %s7
  $region1: #{tpu_custom_call.1} parent=0
    #allocation3 [shape = 'u8[4096]{0}', space=vmem, size = 0x1000, scoped, tag = 'input window, operand 0, single buffered']
    #allocation4 [shape = 's32[2]{0}', space=sflag, size = 0x8, scoped, tag = 'scoped memory for tpu_custom_call.1']
    #allocation5 [shape = 's32[2]{0}', space=sflag, size = 0x8, scoped, tag = 'scoped memory for tpu_custom_call.1']
    #allocation6 [shape = 'u8[8192]{0}', space=vmem, size = 0x2000, scoped, tag = 'input window, operand 1']
    #allocation7 [shape = 's32[2]{0}', space=sflag, size = 0x8, scoped, tag = 'scoped memory for tpu_custom_call.1']
    #allocation8 [shape = 'u8[49152]{0}', space=vmem, size = 0xc000, scoped, tag = 'input window, operand 2, single buffered']
    #allocation9 [shape = 'u8[196608]{0}', space=vmem, size = 0x30000, scoped, tag = 'input window, operand 3, single buffered']
    #allocation10 [shape = 's32[1]{0}', space=sflag, size = 0x4, scoped, tag = 'scoped memory for tpu_custom_call.1']
    #allocation11 [shape = 'u8[8192]{0}', space=vmem, size = 0x2000, scoped, tag = 'output window, operand 0']
    %11 = vsyncpa [#allocation4], 0
    %12 = vsyncpa [#allocation7], 0
    %s13 = scalar_lea.sflag [#allocation7], 1
    %14 = vsyncpa %s13, 0
    %15 = vsyncpa [#allocation10], 0
    %16 = vsyncpa [#allocation5], 0
    %s17 = scalar_lea.sflag [#allocation5], 1
    %18 = vsyncpa %s17, 0
    loop: start=0, step=1, limit=10
    $region2: #{tpu_custom_call.1} parent=1 // loop_pre_header
      _
    $region3: #{tpu_custom_call.1} parent=1 // loop_header
      %s20 = sphi 0, %s24
      %p21 = scmp.ge.s32.totalorder %s20, 10
      %s28 = sphi 0, %s28
      %s30 = sphi 0, %s28
      %s31 = sphi 0, %s30
      %s45 = sphi 0, %s31
      %s51 = sphi 0, %s53
      %s54 = sphi 0, %s51
      %s55 = sphi 0, %s54
      %s71 = sphi 0, %s55
      %s75 = sphi 0, %s75
      %s77 = sphi 0, %s75
      %s78 = sphi 0, %s77
      %s92 = sphi 0, %s78
      %s96 = sphi 0, %s96
      %s98 = sphi 0, %s96
      %s99 = sphi 0, %s98
      %s113 = sphi 0, %s99
      %s117 = sphi 0, %s117
      %s119 = sphi 0, %s117
      %s120 = sphi 0, %s119
      %s134 = sphi 0, %s120
      %s138 = sphi 0, %s138
      %s140 = sphi 0, %s138
      %s141 = sphi 0, %s140
      %s155 = sphi 0, %s141
      %s161 = sphi 0, %s163
      %s164 = sphi 0, %s161
      %s165 = sphi 0, %s164
      %s181 = sphi 0, %s165
    $region4: #{tpu_custom_call.1} parent=1 // loop_header_branch
      %23 = sbr.rel (%p21) target = $region8
    $region5: #{tpu_custom_call.1} parent=1 // loop_body
      %s25 = ssub.s32 %s20, 1
      %s26 = ssub.s32 %s20, 2
      %s27 = sadd.s32 %s20, 1
      %s29 = sadd.s32 %s28, 1
      %p32 = scmp.eq.s32.totalorder %s20, 7
      %p33 = scmp.ne.s32.totalorder %s28, %s30
      %p34 = scmp.eq.s32.totalorder %s20, 0
      %p35 = por %p33, %p34
      %p36 = scmp.ne.s32.totalorder %s28, %s30
      %p37 = scmp.eq.s32.totalorder %s25, 7
      %p38 = por %p36, %p37
      %p39 = scmp.ne.s32.totalorder %s30, %s31
      %p40 = scmp.eq.s32.totalorder %s25, 0
      %p41 = por %p39, %p40
      %p42 = scmp.ne.s32.totalorder %s30, %s31
      %p43 = scmp.eq.s32.totalorder %s26, 7
      %p44 = por %p42, %p43
      %p46 = scmp.ne.s32.totalorder %s31, %s45
      %p47 = scmp.eq.s32.totalorder %s26, 0
      %p48 = por %p46, %p47
      %s49 = ssub.s32 %s20, %s27
      %p50 = scmp.eq.s32.totalorder %s49, 0
      %s52 = sadd.s32 %s51, 1
      %s53 = scalar_select %p50, %s51, %s52
      %p56 = pneg %p50
      %p57 = scmp.eq.s32.totalorder %s20, 7
      %p58 = por %p56, %p57
      %p59 = scmp.ne.s32.totalorder %s51, %s54
      %p60 = scmp.eq.s32.totalorder %s20, 0
      %p61 = por %p59, %p60
      %p62 = scmp.ne.s32.totalorder %s51, %s54
      %p63 = scmp.eq.s32.totalorder %s25, 7
      %p64 = por %p62, %p63
      %p65 = scmp.ne.s32.totalorder %s54, %s55
      %p66 = scmp.eq.s32.totalorder %s25, 0
      %p67 = por %p65, %p66
      %p68 = scmp.ne.s32.totalorder %s54, %s55
      %p69 = scmp.eq.s32.totalorder %s26, 7
      %p70 = por %p68, %p69
      %p72 = scmp.ne.s32.totalorder %s55, %s71
      %p73 = scmp.eq.s32.totalorder %s26, 0
      %p74 = por %p72, %p73
      %s76 = sadd.s32 %s75, 1
      %p79 = scmp.eq.s32.totalorder %s20, 7
      %p80 = scmp.ne.s32.totalorder %s75, %s77
      %p81 = scmp.eq.s32.totalorder %s20, 0
      %p82 = por %p80, %p81
      %p83 = scmp.ne.s32.totalorder %s75, %s77
      %p84 = scmp.eq.s32.totalorder %s25, 7
      %p85 = por %p83, %p84
      %p86 = scmp.ne.s32.totalorder %s77, %s78
      %p87 = scmp.eq.s32.totalorder %s25, 0
      %p88 = por %p86, %p87
      %p89 = scmp.ne.s32.totalorder %s77, %s78
      %p90 = scmp.eq.s32.totalorder %s26, 7
      %p91 = por %p89, %p90
      %p93 = scmp.ne.s32.totalorder %s78, %s92
      %p94 = scmp.eq.s32.totalorder %s26, 0
      %p95 = por %p93, %p94
      %s97 = sadd.s32 %s96, 1
      %p100 = scmp.eq.s32.totalorder %s20, 7
      %p101 = scmp.ne.s32.totalorder %s96, %s98
      %p102 = scmp.eq.s32.totalorder %s20, 0
      %p103 = por %p101, %p102
      %p104 = scmp.ne.s32.totalorder %s96, %s98
      %p105 = scmp.eq.s32.totalorder %s25, 7
      %p106 = por %p104, %p105
      %p107 = scmp.ne.s32.totalorder %s98, %s99
      %p108 = scmp.eq.s32.totalorder %s25, 0
      %p109 = por %p107, %p108
      %p110 = scmp.ne.s32.totalorder %s98, %s99
      %p111 = scmp.eq.s32.totalorder %s26, 7
      %p112 = por %p110, %p111
      %p114 = scmp.ne.s32.totalorder %s99, %s113
      %p115 = scmp.eq.s32.totalorder %s26, 0
      %p116 = por %p114, %p115
      %s118 = sadd.s32 %s117, 1
      %p121 = scmp.eq.s32.totalorder %s20, 7
      %p122 = scmp.ne.s32.totalorder %s117, %s119
      %p123 = scmp.eq.s32.totalorder %s20, 0
      %p124 = por %p122, %p123
      %p125 = scmp.ne.s32.totalorder %s117, %s119
      %p126 = scmp.eq.s32.totalorder %s25, 7
      %p127 = por %p125, %p126
      %p128 = scmp.ne.s32.totalorder %s119, %s120
      %p129 = scmp.eq.s32.totalorder %s25, 0
      %p130 = por %p128, %p129
      %p131 = scmp.ne.s32.totalorder %s119, %s120
      %p132 = scmp.eq.s32.totalorder %s26, 7
      %p133 = por %p131, %p132
      %p135 = scmp.ne.s32.totalorder %s120, %s134
      %p136 = scmp.eq.s32.totalorder %s26, 0
      %p137 = por %p135, %p136
      %s139 = sadd.s32 %s138, 1
      %p142 = scmp.eq.s32.totalorder %s20, 7
      %p143 = scmp.ne.s32.totalorder %s138, %s140
      %p144 = scmp.eq.s32.totalorder %s20, 0
      %p145 = por %p143, %p144
      %p146 = scmp.ne.s32.totalorder %s138, %s140
      %p147 = scmp.eq.s32.totalorder %s25, 7
      %p148 = por %p146, %p147
      %p149 = scmp.ne.s32.totalorder %s140, %s141
      %p150 = scmp.eq.s32.totalorder %s25, 0
      %p151 = por %p149, %p150
      %p152 = scmp.ne.s32.totalorder %s140, %s141
      %p153 = scmp.eq.s32.totalorder %s26, 7
      %p154 = por %p152, %p153
      %p156 = scmp.ne.s32.totalorder %s141, %s155
      %p157 = scmp.eq.s32.totalorder %s26, 0
      %p158 = por %p156, %p157
      %s159 = ssub.s32 %s20, %s27
      %p160 = scmp.eq.s32.totalorder %s159, 0
      %s162 = sadd.s32 %s161, 1
      %s163 = scalar_select %p160, %s161, %s162
      %p166 = pneg %p160
      %p167 = scmp.eq.s32.totalorder %s20, 7
      %p168 = por %p166, %p167
      %p169 = scmp.ne.s32.totalorder %s161, %s164
      %p170 = scmp.eq.s32.totalorder %s20, 0
      %p171 = por %p169, %p170
      %p172 = scmp.ne.s32.totalorder %s161, %s164
      %p173 = scmp.eq.s32.totalorder %s25, 7
      %p174 = por %p172, %p173
      %p175 = scmp.ne.s32.totalorder %s164, %s165
      %p176 = scmp.eq.s32.totalorder %s25, 0
      %p177 = por %p175, %p176
      %p178 = scmp.ne.s32.totalorder %s164, %s165
      %p179 = scmp.eq.s32.totalorder %s26, 7
      %p180 = por %p178, %p179
      %p182 = scmp.ne.s32.totalorder %s165, %s181
      %p183 = scmp.eq.s32.totalorder %s26, 0
      %p184 = por %p182, %p183
      %p185 = scmp.le.s32.totalorder 1, %s20
      %p186 = scmp.lt.s32.totalorder %s20, 9
      %p187 = pnand %p185, %p186
      %p188 = pneg %p187
      // Predicated region
      $region9: #{tpu_custom_call.1} parent=5 // pred_check
        _
      $region10: #{tpu_custom_call.1} parent=5 // pred_check_branch
        %190 = sbr.rel (%p187) target = $region12
      $region11: #{tpu_custom_call.1} parent=5 // pred_region
        %s191 = ssub.s32 %s20, 1
        // Predicated region
        $region13: #{tpu_custom_call.1} parent=11 // pred_check
          %p192 = pneg %p41
        $region14: #{tpu_custom_call.1} parent=11 // pred_check_branch
          %194 = sbr.rel (%p192) target = $region16
        $region15: #{tpu_custom_call.1} parent=11 // pred_region
          %s196 = ssub.s32 128, 128
          %197 = vsyncadd [#allocation4], %s196
          %s199 = sshll.u32 [#allocation3], 4
          %s200 = int_to_ptr.vmem [resolvable:$true] %s199
          %202 = dma.hbm_to_vmem [thread:$0]  %s0, 128, %s200, [#allocation4]
        $region16: #{tpu_custom_call.1} parent=11 // pred_fallthru
          _
        // Predicated region
        $region17: #{tpu_custom_call.1} parent=11 // pred_check
          %p203 = pneg %p88
        $region18: #{tpu_custom_call.1} parent=11 // pred_check_branch
          %205 = sbr.rel (%p203) target = $region20
        $region19: #{tpu_custom_call.1} parent=11 // pred_region
          %s207 = ssub.s32 1536, 1536
          %208 = vsyncadd [#allocation7], %s207
          %s209 = sshll.u32 [#allocation8], 4
          %s210 = int_to_ptr.vmem [resolvable:$true] %s209
          %215 = dma.hbm_to_vmem [thread:$0]  %s2, 1536, %s210, [#allocation7], 384, 384, 24
        $region20: #{tpu_custom_call.1} parent=11 // pred_fallthru
          _
        // Predicated region
        $region21: #{tpu_custom_call.1} parent=11 // pred_check
          %p216 = pneg %p109
        $region22: #{tpu_custom_call.1} parent=11 // pred_check_branch
          %218 = sbr.rel (%p216) target = $region24
        $region23: #{tpu_custom_call.1} parent=11 // pred_region
          %s220 = ssub.s32 6144, 6144
          %221 = vsyncadd [#allocation10], %s220
          %s222 = sshll.u32 [#allocation9], 4
          %s223 = int_to_ptr.vmem [resolvable:$true] %s222
          %228 = dma.hbm_to_vmem [thread:$0]  %s3, 6144, %s223, [#allocation10], 384, 384, 24
        $region24: #{tpu_custom_call.1} parent=11 // pred_fallthru
          _
        // Predicated region
        $region25: #{tpu_custom_call.1} parent=11 // pred_check
          %p229 = pneg %p130
        $region26: #{tpu_custom_call.1} parent=11 // pred_check_branch
          %231 = sbr.rel (%p229) target = $region28
        $region27: #{tpu_custom_call.1} parent=11 // pred_region
          _
        $region28: #{tpu_custom_call.1} parent=11 // pred_fallthru
          _
        // Predicated region
        $region29: #{tpu_custom_call.1} parent=11 // pred_check
          %p232 = pneg %p151
        $region30: #{tpu_custom_call.1} parent=11 // pred_check_branch
          %234 = sbr.rel (%p232) target = $region32
        $region31: #{tpu_custom_call.1} parent=11 // pred_region
          _
        $region32: #{tpu_custom_call.1} parent=11 // pred_fallthru
          _
      $region12: #{tpu_custom_call.1} parent=5 // pred_fallthru
        _
      %p235 = scmp.lt.s32.totalorder %s20, 8
      // Predicated region
      $region33: #{tpu_custom_call.1} parent=5 // pred_check
        %p236 = pneg %p235
      $region34: #{tpu_custom_call.1} parent=5 // pred_check_branch
        %238 = sbr.rel (%p236) target = $region36
      $region35: #{tpu_custom_call.1} parent=5 // pred_region
        // Predicated region
        $region37: #{tpu_custom_call.1} parent=35 // pred_check
          %p239 = pneg %p61
        $region38: #{tpu_custom_call.1} parent=35 // pred_check_branch
          %241 = sbr.rel (%p239) target = $region40
        $region39: #{tpu_custom_call.1} parent=35 // pred_region
          %s242 = sand.u32 %s20, 1
          %s243 = scalar_lea.sflag [#allocation7], %s242
          %s244 = sand.u32 %s51, 1
          %s245 = smul.addr %s244, 8
          %s246 = scalar_lea.vmem [#allocation6], %s245
          %s248 = ssub.s32 128, 128
          %249 = vsyncadd %s243, %s248
          %s250 = smul.addr %s20, 128
          %s251 = scalar_lea.hbm %s1, %s250
          %s253 = sshll.u32 %s246, 4
          %s254 = int_to_ptr.vmem [resolvable:$true] %s253
          %256 = dma.hbm_to_vmem [thread:$0]  %s251, 128, %s254, %s243
        $region40: #{tpu_custom_call.1} parent=35 // pred_fallthru
          _
      $region36: #{tpu_custom_call.1} parent=5 // pred_fallthru
        _
      %p257 = scmp.le.s32.totalorder 1, %s20
      %p258 = scmp.lt.s32.totalorder %s20, 9
      %p259 = pnand %p257, %p258
      %p260 = pneg %p259
      // Predicated region
      $region41: #{tpu_custom_call.1} parent=5 // pred_check
        _
      $region42: #{tpu_custom_call.1} parent=5 // pred_check_branch
        %262 = sbr.rel (%p259) target = $region44
      $region43: #{tpu_custom_call.1} parent=5 // pred_region
        %s263 = ssub.s32 %s20, 1
        // Predicated region
        $region45: #{tpu_custom_call.1} parent=43 // pred_check
          %p264 = pneg %p41
        $region46: #{tpu_custom_call.1} parent=43 // pred_check_branch
          %266 = sbr.rel (%p264) target = $region48
        $region47: #{tpu_custom_call.1} parent=43 // pred_region
          %267 = dma.done [#allocation4], 128
        $region48: #{tpu_custom_call.1} parent=43 // pred_fallthru
          _
        %s268 = sand.u32 %s25, 1
        %s269 = scalar_lea.sflag [#allocation7], %s268
        %s270 = sand.u32 %s54, 1
        %s271 = smul.addr %s270, 8
        %s272 = scalar_lea.vmem [#allocation6], %s271
        // Predicated region
        $region49: #{tpu_custom_call.1} parent=43 // pred_check
          %p273 = pneg %p67
        $region50: #{tpu_custom_call.1} parent=43 // pred_check_branch
          %275 = sbr.rel (%p273) target = $region52
        $region51: #{tpu_custom_call.1} parent=43 // pred_region
          %276 = dma.done %s269, 128
        $region52: #{tpu_custom_call.1} parent=43 // pred_fallthru
          _
        // Predicated region
        $region53: #{tpu_custom_call.1} parent=43 // pred_check
          %p277 = pneg %p88
        $region54: #{tpu_custom_call.1} parent=43 // pred_check_branch
          %279 = sbr.rel (%p277) target = $region56
        $region55: #{tpu_custom_call.1} parent=43 // pred_region
          %280 = dma.done [#allocation7], 1536
        $region56: #{tpu_custom_call.1} parent=43 // pred_fallthru
          _
        // Predicated region
        $region57: #{tpu_custom_call.1} parent=43 // pred_check
          %p281 = pneg %p109
        $region58: #{tpu_custom_call.1} parent=43 // pred_check_branch
          %283 = sbr.rel (%p281) target = $region60
        $region59: #{tpu_custom_call.1} parent=43 // pred_region
          %284 = dma.done [#allocation10], 6144
        $region60: #{tpu_custom_call.1} parent=43 // pred_fallthru
          _
        %p285 = pneg %p41
        %p286 = pneg %p38
        %s287 = sand.u32 %s25, 1
        %s288 = scalar_lea.sflag [#allocation7], %s287
        %s289 = sand.u32 %s54, 1
        %s290 = smul.addr %s289, 8
        %s291 = scalar_lea.vmem [#allocation6], %s290
        %p292 = pneg %p67
        %p293 = pneg %p64
        %p294 = pneg %p88
        %p295 = pneg %p85
        %p296 = pneg %p109
        %p297 = pneg %p106
        %p298 = pneg %p130
        %p299 = pneg %p127
        %p300 = pneg %p151
        %p301 = pneg %p148
        %p302 = pneg %p177
        %p303 = pneg %p174
        %s304 = sand.u32 %s164, 1
        %s305 = scalar_lea.sflag [#allocation5], %s304
        %s306 = sand.u32 %s164, 1
        %s307 = smul.addr %s306, 8
        %s308 = scalar_lea.vmem [#allocation11], %s307
        %p309 = scmp.eq.s32.totalorder %s25, 0
        // Predicated region
        $region61: #{tpu_custom_call.1} parent=43 // pred_check
          %p310 = pneg %p309
        $region62: #{tpu_custom_call.1} parent=43 // pred_check_branch
          %312 = sbr.rel (%p310) target = $region64
        $region63: #{tpu_custom_call.1} parent=43 // pred_region
          %v313 = vld [vmem:[#allocation3] sm:$0xff]
          %314 = vst [vmem:[#allocation2] sm:$0xff] %v313
        $region64: #{tpu_custom_call.1} parent=43 // pred_fallthru
          _
        %v315 = vld [vmem:[#allocation2] sm:$0xff]
        %v316 = vld [vmem:[%s272] sm:$0xff]
        %v317 = vld [vmem:[#allocation8] sm:$0xff]
        %v318 = vld [vmem:[#allocation8 + $0x8] sm:$0xff]
        %v319 = vld [vmem:[#allocation8 + $0x10] sm:$0xff]
        %v320 = vld [vmem:[#allocation8 + $0x18] sm:$0xff]
        %v321 = vld [vmem:[#allocation8 + $0x20] sm:$0xff]
        %v322 = vld [vmem:[#allocation8 + $0x28] sm:$0xff]
        %v323 = vld [vmem:[#allocation8 + $0x30] sm:$0xff]
        %v324 = vld [vmem:[#allocation8 + $0x38] sm:$0xff]
        %v325 = vld [vmem:[#allocation8 + $0x40] sm:$0xff]
        %v326 = vld [vmem:[#allocation8 + $0x48] sm:$0xff]
        %v327 = vld [vmem:[#allocation8 + $0x50] sm:$0xff]
        %v328 = vld [vmem:[#allocation8 + $0x58] sm:$0xff]
        %v329 = vld [vmem:[%s4] sm:$0x7]
        %v331 = vlaneseq
        %v332 = vshrl.u32 %v331, 7
        %v333 = vsub.s32 0, %v332
        %v334 = vrot.slane %v329, %v333
        %v335 = vlaneseq
        %v336 = vshrl.u32 %v335, 7
        %v337 = vsub.s32 1, %v336
        %v338 = vrot.slane %v329, %v337
        %v339 = vlaneseq
        %v340 = vshrl.u32 %v339, 7
        %v341 = vsub.s32 2, %v340
        %v342 = vrot.slane %v329, %v341
        %vm346 = vcmask 261120
        %v348 = vsel %vm346, %v316, 0
        %350 = vmatprep.subr.mxu0 0.0
        %351 = vmatpush1.msra.mxu0 0.0
        %352 = vmatprep.subr.mxu0 0.0
        %353 = vmatpush1.msra.mxu0 0.0
        %354 = vmatprep.subr.mxu0 0.0
        %355 = vmatpush1.msra.mxu0 0.0
        %356 = vmatprep.subr.mxu0 0.0
        %357 = vmatpush1.msra.mxu0 0.0
        %358 = vmatprep.subr.mxu0 0.0
        %359 = vmatpush1.msra.mxu0 0.0
        %360 = vmatprep.subr.mxu0 0.0
        %361 = vmatpush1.msra.mxu0 0.0
        %362 = vmatprep.subr.mxu0 0.0
        %363 = vmatpush1.msra.mxu0 0.0
        %364 = vmatprep.subr.mxu0 0.0
        %365 = vmatpush1.msra.mxu0 0.0
        %366 = vmatprep.subr.mxu0 0.0
        %367 = vmatpush1.msra.mxu0 0.0
        %368 = vmatprep.subr.mxu0 0.0
        %369 = vmatpush1.msra.mxu0 0.0
        %370 = vmatprep.subr.mxu0 0.0
        %371 = vmatpush1.msra.mxu0 0.0
        %372 = vmatprep.subr.mxu0 0.0
        %373 = vmatpush1.msra.mxu0 0.0
        %374 = vmatprep.subr.mxu0 %v327
        %375 = vmatpush1.msra.mxu0 %v326
        %376 = vmatprep.subr.mxu0 %v324
        %377 = vmatpush1.msra.mxu0 %v323
        %378 = vmatprep.subr.mxu0 %v321
        %379 = vmatpush1.msra.mxu0 %v320
        %380 = vmatprep.subr.mxu0 %v318
        %381 = vmatpush1.msra.mxu0 %v317
        %382 = vmatprep.subr.mxu0 0.0
        %383 = vmatpush2.msra.mxu0 0.0
        %384 = vmatprep.subr.mxu0 0.0
        %385 = vmatpush2.msra.mxu0 0.0
        %386 = vmatprep.subr.mxu0 0.0
        %387 = vmatpush2.msra.mxu0 0.0
        %388 = vmatprep.subr.mxu0 0.0
        %389 = vmatpush2.msra.mxu0 0.0
        %390 = vmatprep.subr.mxu0 0.0
        %391 = vmatpush2.msra.mxu0 0.0
        %392 = vmatprep.subr.mxu0 0.0
        %393 = vmatpush2.msra.mxu0 0.0
        %394 = vmatprep.subr.mxu0 0.0
        %395 = vmatpush2.msra.mxu0 0.0
        %396 = vmatprep.subr.mxu0 0.0
        %397 = vmatpush2.msra.mxu0 0.0
        %398 = vmatprep.subr.mxu0 0.0
        %399 = vmatpush2.msra.mxu0 0.0
        %400 = vmatprep.subr.mxu0 0.0
        %401 = vmatpush2.msra.mxu0 0.0
        %402 = vmatprep.subr.mxu0 0.0
        %403 = vmatpush2.msra.mxu0 0.0
        %404 = vmatprep.subr.mxu0 0.0
        %405 = vmatpush2.msra.mxu0 0.0
        %406 = vmatprep.subr.mxu0 0.0
        %407 = vmatpush2.msra.mxu0 0.0
        %408 = vmatprep.subr.mxu0 0.0
        %409 = vmatpush2.msra.mxu0 0.0
        %410 = vmatprep.subr.mxu0 0.0
        %411 = vmatpush2.msra.mxu0 0.0
        %412 = vmatprep.subr.mxu0 0.0
        %413 = vmatpush2.msra.mxu0 0.0
        %414 = vmatprep.mubr.f32.mxu0 0.0
        %415 = vmatmul.mubr.f32.gmra.mxu0 %v348
        %v416 = vpop.f32.mrf.mxu0
        %v417 = vadd.f32 %v334, %v416
        %v418 = vpop.f32.mrf.mxu0
        %v419 = vadd.f32 %v338, %v418
        %420 = vdwg.mxu0
        %421 = vmatprep.subr.mxu0 0.0
        %422 = vmatpush1.msra.mxu0 0.0
        %423 = vmatprep.subr.mxu0 0.0
        %424 = vmatpush1.msra.mxu0 0.0
        %425 = vmatprep.subr.mxu0 0.0
        %426 = vmatpush1.msra.mxu0 0.0
        %427 = vmatprep.subr.mxu0 0.0
        %428 = vmatpush1.msra.mxu0 0.0
        %429 = vmatprep.subr.mxu0 0.0
        %430 = vmatpush1.msra.mxu0 0.0
        %431 = vmatprep.subr.mxu0 0.0
        %432 = vmatpush1.msra.mxu0 0.0
        %433 = vmatprep.subr.mxu0 0.0
        %434 = vmatpush1.msra.mxu0 0.0
        %435 = vmatprep.subr.mxu0 0.0
        %436 = vmatpush1.msra.mxu0 0.0
        %437 = vmatprep.subr.mxu0 0.0
        %438 = vmatpush1.msra.mxu0 0.0
        %439 = vmatprep.subr.mxu0 0.0
        %440 = vmatpush1.msra.mxu0 0.0
        %441 = vmatprep.subr.mxu0 0.0
        %442 = vmatpush1.msra.mxu0 0.0
        %443 = vmatprep.subr.mxu0 0.0
        %444 = vmatpush1.msra.mxu0 0.0
        %445 = vmatprep.subr.mxu0 0.0
        %446 = vmatpush1.msra.mxu0 %v328
        %447 = vmatprep.subr.mxu0 0.0
        %448 = vmatpush1.msra.mxu0 %v325
        %449 = vmatprep.subr.mxu0 0.0
        %450 = vmatpush1.msra.mxu0 %v322
        %451 = vmatprep.subr.mxu0 0.0
        %452 = vmatpush1.msra.mxu0 %v319
        %453 = vmatprep.subr.mxu0 0.0
        %454 = vmatpush2.msra.mxu0 0.0
        %455 = vmatprep.subr.mxu0 0.0
        %456 = vmatpush2.msra.mxu0 0.0
        %457 = vmatprep.subr.mxu0 0.0
        %458 = vmatpush2.msra.mxu0 0.0
        %459 = vmatprep.subr.mxu0 0.0
        %460 = vmatpush2.msra.mxu0 0.0
        %461 = vmatprep.subr.mxu0 0.0
        %462 = vmatpush2.msra.mxu0 0.0
        %463 = vmatprep.subr.mxu0 0.0
        %464 = vmatpush2.msra.mxu0 0.0
        %465 = vmatprep.subr.mxu0 0.0
        %466 = vmatpush2.msra.mxu0 0.0
        %467 = vmatprep.subr.mxu0 0.0
        %468 = vmatpush2.msra.mxu0 0.0
        %469 = vmatprep.subr.mxu0 0.0
        %470 = vmatpush2.msra.mxu0 0.0
        %471 = vmatprep.subr.mxu0 0.0
        %472 = vmatpush2.msra.mxu0 0.0
        %473 = vmatprep.subr.mxu0 0.0
        %474 = vmatpush2.msra.mxu0 0.0
        %475 = vmatprep.subr.mxu0 0.0
        %476 = vmatpush2.msra.mxu0 0.0
        %477 = vmatprep.subr.mxu0 0.0
        %478 = vmatpush2.msra.mxu0 0.0
        %479 = vmatprep.subr.mxu0 0.0
        %480 = vmatpush2.msra.mxu0 0.0
        %481 = vmatprep.subr.mxu0 0.0
        %482 = vmatpush2.msra.mxu0 0.0
        %483 = vmatprep.subr.mxu0 0.0
        %484 = vmatpush2.msra.mxu0 0.0
        %485 = vmatprep.mubr.f32.mxu0 0.0
        %486 = vmatmul.mubr.f32.gmra.mxu0 %v348
        %v487 = vpop.f32.mrf.mxu0
        %v488 = vadd.f32 %v342, %v487
        %v489 = vpop.f32.mrf.mxu0
        %490 = vdwg.mxu0
        %v491 = vld [vmem:[#allocation9] sm:$0xff]
        %v492 = vld [vmem:[#allocation9 + $0x8] sm:$0xff]
        %v493 = vld [vmem:[#allocation9 + $0x10] sm:$0xff]
        %v494 = vld [vmem:[#allocation9 + $0x18] sm:$0xff]
        %v495 = vld [vmem:[#allocation9 + $0x20] sm:$0xff]
        %v496 = vld [vmem:[#allocation9 + $0x28] sm:$0xff]
        %v497 = vld [vmem:[#allocation9 + $0x30] sm:$0xff]
        %v498 = vld [vmem:[#allocation9 + $0x38] sm:$0xff]
        %v499 = vld [vmem:[#allocation9 + $0x40] sm:$0xff]
        %v500 = vld [vmem:[#allocation9 + $0x48] sm:$0xff]
        %v501 = vld [vmem:[#allocation9 + $0x50] sm:$0xff]
        %v502 = vld [vmem:[#allocation9 + $0x58] sm:$0xff]
        %v503 = vld [vmem:[#allocation9 + $0x60] sm:$0xff]
        %v504 = vld [vmem:[#allocation9 + $0x68] sm:$0xff]
        %v505 = vld [vmem:[#allocation9 + $0x70] sm:$0xff]
        %v506 = vld [vmem:[#allocation9 + $0x78] sm:$0xff]
        %v507 = vld [vmem:[#allocation9 + $0x80] sm:$0xff]
        %v508 = vld [vmem:[#allocation9 + $0x88] sm:$0xff]
        %v509 = vld [vmem:[#allocation9 + $0x90] sm:$0xff]
        %v510 = vld [vmem:[#allocation9 + $0x98] sm:$0xff]
        %v511 = vld [vmem:[#allocation9 + $0xa0] sm:$0xff]
        %v512 = vld [vmem:[#allocation9 + $0xa8] sm:$0xff]
        %v513 = vld [vmem:[#allocation9 + $0xb0] sm:$0xff]
        %v514 = vld [vmem:[#allocation9 + $0xb8] sm:$0xff]
        %v515 = vld [vmem:[#allocation9 + $0xc0] sm:$0xff]
        %v516 = vld [vmem:[#allocation9 + $0xc8] sm:$0xff]
        %v517 = vld [vmem:[#allocation9 + $0xd0] sm:$0xff]
        %v518 = vld [vmem:[#allocation9 + $0xd8] sm:$0xff]
        %v519 = vld [vmem:[#allocation9 + $0xe0] sm:$0xff]
        %v520 = vld [vmem:[#allocation9 + $0xe8] sm:$0xff]
        %v521 = vld [vmem:[#allocation9 + $0xf0] sm:$0xff]
        %v522 = vld [vmem:[#allocation9 + $0xf8] sm:$0xff]
        %v523 = vld [vmem:[#allocation9 + $0x100] sm:$0xff]
        %v524 = vld [vmem:[#allocation9 + $0x108] sm:$0xff]
        %v525 = vld [vmem:[#allocation9 + $0x110] sm:$0xff]
        %v526 = vld [vmem:[#allocation9 + $0x118] sm:$0xff]
        %v527 = vld [vmem:[#allocation9 + $0x120] sm:$0xff]
        %v528 = vld [vmem:[#allocation9 + $0x128] sm:$0xff]
        %v529 = vld [vmem:[#allocation9 + $0x130] sm:$0xff]
        %v530 = vld [vmem:[#allocation9 + $0x138] sm:$0xff]
        %v531 = vld [vmem:[#allocation9 + $0x140] sm:$0xff]
        %v532 = vld [vmem:[#allocation9 + $0x148] sm:$0xff]
        %v533 = vld [vmem:[#allocation9 + $0x150] sm:$0xff]
        %v534 = vld [vmem:[#allocation9 + $0x158] sm:$0xff]
        %v535 = vld [vmem:[#allocation9 + $0x160] sm:$0xff]
        %v536 = vld [vmem:[#allocation9 + $0x168] sm:$0xff]
        %v537 = vld [vmem:[#allocation9 + $0x170] sm:$0xff]
        %v538 = vld [vmem:[#allocation9 + $0x178] sm:$0xff]
        %v539 = vld [vmem:[%s5] sm:$0x7]
        %v541 = vlaneseq
        %v542 = vshrl.u32 %v541, 7
        %v543 = vsub.s32 0, %v542
        %v544 = vrot.slane %v539, %v543
        %v545 = vlaneseq
        %v546 = vshrl.u32 %v545, 7
        %v547 = vsub.s32 1, %v546
        %v548 = vrot.slane %v539, %v547
        %v549 = vlaneseq
        %v550 = vshrl.u32 %v549, 7
        %v551 = vsub.s32 2, %v550
        %v552 = vrot.slane %v539, %v551
        %556 = vmatprep.subr.mxu0 %v537
        %557 = vmatpush1.msra.mxu0 %v536
        %558 = vmatprep.subr.mxu0 %v534
        %559 = vmatpush1.msra.mxu0 %v533
        %560 = vmatprep.subr.mxu0 %v531
        %561 = vmatpush1.msra.mxu0 %v530
        %562 = vmatprep.subr.mxu0 %v528
        %563 = vmatpush1.msra.mxu0 %v527
        %564 = vmatprep.subr.mxu0 %v525
        %565 = vmatpush1.msra.mxu0 %v524
        %566 = vmatprep.subr.mxu0 %v522
        %567 = vmatpush1.msra.mxu0 %v521
        %568 = vmatprep.subr.mxu0 %v519
        %569 = vmatpush1.msra.mxu0 %v518
        %570 = vmatprep.subr.mxu0 %v516
        %571 = vmatpush1.msra.mxu0 %v515
        %572 = vmatprep.subr.mxu0 %v513
        %573 = vmatpush1.msra.mxu0 %v512
        %574 = vmatprep.subr.mxu0 %v510
        %575 = vmatpush1.msra.mxu0 %v509
        %576 = vmatprep.subr.mxu0 %v507
        %577 = vmatpush1.msra.mxu0 %v506
        %578 = vmatprep.subr.mxu0 %v504
        %579 = vmatpush1.msra.mxu0 %v503
        %580 = vmatprep.subr.mxu0 %v501
        %581 = vmatpush1.msra.mxu0 %v500
        %582 = vmatprep.subr.mxu0 %v498
        %583 = vmatpush1.msra.mxu0 %v497
        %584 = vmatprep.subr.mxu0 %v495
        %585 = vmatpush1.msra.mxu0 %v494
        %586 = vmatprep.subr.mxu0 %v492
        %587 = vmatpush1.msra.mxu0 %v491
        %588 = vmatprep.subr.mxu0 0.0
        %589 = vmatpush2.msra.mxu0 0.0
        %590 = vmatprep.subr.mxu0 0.0
        %591 = vmatpush2.msra.mxu0 0.0
        %592 = vmatprep.subr.mxu0 0.0
        %593 = vmatpush2.msra.mxu0 0.0
        %594 = vmatprep.subr.mxu0 0.0
        %595 = vmatpush2.msra.mxu0 0.0
        %596 = vmatprep.subr.mxu0 0.0
        %597 = vmatpush2.msra.mxu0 0.0
        %598 = vmatprep.subr.mxu0 0.0
        %599 = vmatpush2.msra.mxu0 0.0
        %600 = vmatprep.subr.mxu0 0.0
        %601 = vmatpush2.msra.mxu0 0.0
        %602 = vmatprep.subr.mxu0 0.0
        %603 = vmatpush2.msra.mxu0 0.0
        %604 = vmatprep.subr.mxu0 0.0
        %605 = vmatpush2.msra.mxu0 0.0
        %606 = vmatprep.subr.mxu0 0.0
        %607 = vmatpush2.msra.mxu0 0.0
        %608 = vmatprep.subr.mxu0 0.0
        %609 = vmatpush2.msra.mxu0 0.0
        %610 = vmatprep.subr.mxu0 0.0
        %611 = vmatpush2.msra.mxu0 0.0
        %612 = vmatprep.subr.mxu0 0.0
        %613 = vmatpush2.msra.mxu0 0.0
        %614 = vmatprep.subr.mxu0 0.0
        %615 = vmatpush2.msra.mxu0 0.0
        %616 = vmatprep.subr.mxu0 0.0
        %617 = vmatpush2.msra.mxu0 0.0
        %618 = vmatprep.subr.mxu0 0.0
        %619 = vmatpush2.msra.mxu0 0.0
        %620 = vmatprep.mubr.f32.mxu0 0.0
        %621 = vmatmul.mubr.f32.gmra.mxu0 %v315
        %v622 = vpop.f32.mrf.mxu0
        %v623 = vadd.f32 %v544, %v622
        %v624 = vpop.f32.mrf.mxu0
        %v625 = vadd.f32 %v548, %v624
        %626 = vdwg.mxu0
        %627 = vmatprep.subr.mxu0 0.0
        %628 = vmatpush1.msra.mxu0 %v538
        %629 = vmatprep.subr.mxu0 0.0
        %630 = vmatpush1.msra.mxu0 %v535
        %631 = vmatprep.subr.mxu0 0.0
        %632 = vmatpush1.msra.mxu0 %v532
        %633 = vmatprep.subr.mxu0 0.0
        %634 = vmatpush1.msra.mxu0 %v529
        %635 = vmatprep.subr.mxu0 0.0
        %636 = vmatpush1.msra.mxu0 %v526
        %637 = vmatprep.subr.mxu0 0.0
        %638 = vmatpush1.msra.mxu0 %v523
        %639 = vmatprep.subr.mxu0 0.0
        %640 = vmatpush1.msra.mxu0 %v520
        %641 = vmatprep.subr.mxu0 0.0
        %642 = vmatpush1.msra.mxu0 %v517
        %643 = vmatprep.subr.mxu0 0.0
        %644 = vmatpush1.msra.mxu0 %v514
        %645 = vmatprep.subr.mxu0 0.0
        %646 = vmatpush1.msra.mxu0 %v511
        %647 = vmatprep.subr.mxu0 0.0
        %648 = vmatpush1.msra.mxu0 %v508
        %649 = vmatprep.subr.mxu0 0.0
        %650 = vmatpush1.msra.mxu0 %v505
        %651 = vmatprep.subr.mxu0 0.0
        %652 = vmatpush1.msra.mxu0 %v502
        %653 = vmatprep.subr.mxu0 0.0
        %654 = vmatpush1.msra.mxu0 %v499
        %655 = vmatprep.subr.mxu0 0.0
        %656 = vmatpush1.msra.mxu0 %v496
        %657 = vmatprep.subr.mxu0 0.0
        %658 = vmatpush1.msra.mxu0 %v493
        %659 = vmatprep.subr.mxu0 0.0
        %660 = vmatpush2.msra.mxu0 0.0
        %661 = vmatprep.subr.mxu0 0.0
        %662 = vmatpush2.msra.mxu0 0.0
        %663 = vmatprep.subr.mxu0 0.0
        %664 = vmatpush2.msra.mxu0 0.0
        %665 = vmatprep.subr.mxu0 0.0
        %666 = vmatpush2.msra.mxu0 0.0
        %667 = vmatprep.subr.mxu0 0.0
        %668 = vmatpush2.msra.mxu0 0.0
        %669 = vmatprep.subr.mxu0 0.0
        %670 = vmatpush2.msra.mxu0 0.0
        %671 = vmatprep.subr.mxu0 0.0
        %672 = vmatpush2.msra.mxu0 0.0
        %673 = vmatprep.subr.mxu0 0.0
        %674 = vmatpush2.msra.mxu0 0.0
        %675 = vmatprep.subr.mxu0 0.0
        %676 = vmatpush2.msra.mxu0 0.0
        %677 = vmatprep.subr.mxu0 0.0
        %678 = vmatpush2.msra.mxu0 0.0
        %679 = vmatprep.subr.mxu0 0.0
        %680 = vmatpush2.msra.mxu0 0.0
        %681 = vmatprep.subr.mxu0 0.0
        %682 = vmatpush2.msra.mxu0 0.0
        %683 = vmatprep.subr.mxu0 0.0
        %684 = vmatpush2.msra.mxu0 0.0
        %685 = vmatprep.subr.mxu0 0.0
        %686 = vmatpush2.msra.mxu0 0.0
        %687 = vmatprep.subr.mxu0 0.0
        %688 = vmatpush2.msra.mxu0 0.0
        %689 = vmatprep.subr.mxu0 0.0
        %690 = vmatpush2.msra.mxu0 0.0
        %691 = vmatprep.mubr.f32.mxu0 0.0
        %692 = vmatmul.mubr.f32.gmra.mxu0 %v315
        %v693 = vpop.f32.mrf.mxu0
        %v694 = vadd.f32 %v552, %v693
        %v695 = vpop.f32.mrf.mxu0
        %696 = vdwg.mxu0
        %v697 = vadd.f32 %v417, %v623
        %v698 = vxor.u32 %v697, 2147483648
        %v699 = vmul.f32 %v698, 1.442695
        %v700 = vpow.pop %v699
        %v701 = vadd.f32 %v700, 1.0
        %v702 = vrcp.pop %v701
        %v703 = vmul.f32 1.0, %v702
        %v704 = vadd.f32 %v419, %v625
        %v705 = vxor.u32 %v704, 2147483648
        %v706 = vmul.f32 %v705, 1.442695
        %v707 = vpow.pop %v706
        %v708 = vadd.f32 %v707, 1.0
        %v709 = vrcp.pop %v708
        %v710 = vmul.f32 1.0, %v709
        %v711 = vmul.f32 %v703, %v694
        %v712 = vadd.f32 %v488, %v711
        %v713 = vtanh.pop %v712
        %v714 = vsub.f32 1.0, %v710
        %v715 = vmul.f32 %v714, %v713
        %v716 = vmul.f32 %v710, %v315
        %v717 = vadd.f32 %v715, %v716
        %718 = vst [vmem:[#allocation2] sm:$0xff] %v717
        %719 = vst [vmem:[%s308] sm:$0xff] %v717
        %s720 = sand.u32 %s164, 1
        %s721 = scalar_lea.sflag [#allocation5], %s720
        %s722 = sand.u32 %s164, 1
        %s723 = smul.addr %s722, 8
        %s724 = scalar_lea.vmem [#allocation11], %s723
        // Predicated region
        $region65: #{tpu_custom_call.1} parent=43 // pred_check
          %p725 = pneg %p174
        $region66: #{tpu_custom_call.1} parent=43 // pred_check_branch
          %727 = sbr.rel (%p725) target = $region68
        $region67: #{tpu_custom_call.1} parent=43 // pred_region
          %s729 = ssub.s32 128, 128
          %730 = vsyncadd %s721, %s729
          %s731 = smul.addr %s25, 128
          %s732 = scalar_lea.hbm %s6, %s731
          %s734 = sshll.u32 %s724, 4
          %s735 = int_to_ptr.vmem [resolvable:$true] %s734
          %737 = dma.vmem_to_hbm [thread:$0]  %s735, 128, %s732, %s721
        $region68: #{tpu_custom_call.1} parent=43 // pred_fallthru
          _
      $region44: #{tpu_custom_call.1} parent=5 // pred_fallthru
        _
      %p738 = scmp.le.s32.totalorder 2, %s20
      // Predicated region
      $region69: #{tpu_custom_call.1} parent=5 // pred_check
        %p739 = pneg %p738
      $region70: #{tpu_custom_call.1} parent=5 // pred_check_branch
        %741 = sbr.rel (%p739) target = $region72
      $region71: #{tpu_custom_call.1} parent=5 // pred_region
        %s742 = ssub.s32 %s20, 2
        // Predicated region
        $region73: #{tpu_custom_call.1} parent=71 // pred_check
          %p743 = pneg %p180
        $region74: #{tpu_custom_call.1} parent=71 // pred_check_branch
          %745 = sbr.rel (%p743) target = $region76
        $region75: #{tpu_custom_call.1} parent=71 // pred_region
          %s746 = sand.u32 %s165, 1
          %s747 = scalar_lea.sflag [#allocation5], %s746
          %s748 = sand.u32 %s165, 1
          %s749 = smul.addr %s748, 8
          %s750 = scalar_lea.vmem [#allocation11], %s749
          %751 = dma.done %s747, 128
        $region76: #{tpu_custom_call.1} parent=71 // pred_fallthru
          _
      $region72: #{tpu_custom_call.1} parent=5 // pred_fallthru
        _
    $region6: #{tpu_custom_call.1} parent=1 // loop_footer
      %s24 = sadd.s32 1, %s20
    $region7: #{tpu_custom_call.1} parent=1 // loop_footer_branch
      %19 = sbr.rel target = $region3
    $region8: #{tpu_custom_call.1} parent=1 // loop_exit
      _
    %752 = vsyncpa [#allocation4], 1
    %s753 = scalar_lea.sflag [#allocation4], 1
    %754 = vsyncpa %s753, 1
    %755 = vsyncpa [#allocation7], 1
    %s756 = scalar_lea.sflag [#allocation7], 1
    %757 = vsyncpa %s756, 1
    %758 = vsyncpa [#allocation10], 1
    %759 = vsyncpa [#allocation5], 1
    %s760 = scalar_lea.sflag [#allocation5], 1
    %761 = vsyncpa %s760, 1

</llo_original>
